<compile_context>
chip_gen: v6e
topology: v6e:2x2x1
jax: 0.10.0
libtpu: 0.0.40
codegen_flags: <defaults>
</compile_context>

<pallas_src>
import jax
import jax.numpy as jnp
from jax import lax
from jax.experimental import pallas as pl
from jax.experimental.pallas import tpu as pltpu


def _ffn_kernel(x_ref, w1_ref, w2_ref, o_ref, acc_ref):
    # x_ref:   (tm, D)   row tile of the flattened (padded) input
    # w1_ref:  (th, D)   rows [j*th, (j+1)*th) of W1  (W1 is [Dh, D])
    # w2_ref:  (D, th)   cols [j*th, (j+1)*th) of W2  (W2 is [D, Dh])
    # o_ref:   (tm, D)   output tile (resident across the Dh/reduction axis)
    # acc_ref: (tm, D)   float32 accumulator scratch
    j = pl.program_id(1)

    @pl.when(j == 0)
    def _():
        acc_ref[...] = jnp.zeros_like(acc_ref)

    # fc1 partial: (tm, D) x (th, D) contracted on D -> (tm, th), f32 acc (MXU)
    h = lax.dot_general(
        x_ref[...], w1_ref[...],
        dimension_numbers=(((1,), (1,)), ((), ())),
        preferred_element_type=jnp.float32,
    )
    # relu(.)^2 activation (VPU), cast back to the compute dtype for the MXU
    h = jnp.maximum(h, 0.0)
    h = (h * h).astype(x_ref.dtype)

    # fc2 partial: (tm, th) x (D, th) contracted on th -> (tm, D)
    acc_ref[...] += lax.dot_general(
        h, w2_ref[...],
        dimension_numbers=(((1,), (1,)), ((), ())),
        preferred_element_type=jnp.float32,
    )

    @pl.when(j == pl.num_programs(1) - 1)
    def _():
        o_ref[...] = acc_ref[...].astype(o_ref.dtype)


def ffn(x, w1, w2, *, tm=None, th=None):
    """x: [B, T, D]; w1: [Dh, D]; w2: [D, Dh]  ->  [B, T, D] (same dtype)."""
    B, T, D = x.shape
    Dh = w1.shape[0]
    assert w1.shape == (Dh, D), w1.shape
    assert w2.shape == (D, Dh), w2.shape

    M = B * T
    x2d = x.reshape(M, D)  # lane-dense slab: rows on sublanes, D on lanes

    # --- row-tile selection (+ zero padding so arbitrary B*T runs cleanly) ---
    if tm is None:
        if M <= 512:
            tm = max(8, -(-M // 8) * 8)        # round M up to a multiple of 8
        else:
            tm = 256
    Mp = pl.cdiv(M, tm) * tm
    if Mp != M:
        x2d = jnp.pad(x2d, ((0, Mp - M), (0, 0)))

    # --- hidden-tile selection (reduction axis of the second matmul) ---
    if th is None:
        th = Dh if Dh <= 1024 else 512
    if Dh % th != 0:
        th = Dh                                 # full hidden dim as one tile

    # Explicit VMEM budget: double-buffered in/out tiles + f32 accumulator,
    # with headroom; capped so it never exceeds v7x's physical 64 MiB.
    itemsize = jnp.dtype(x.dtype).itemsize
    tiles_bytes = (
        2 * (tm * D + th * D + D * th) * itemsize   # double-buffered inputs
        + 2 * tm * D * itemsize                     # double-buffered output
        + tm * D * 4                                # f32 accumulator scratch
    )
    vmem_limit = int(min(max(2 * tiles_bytes, 16 * 1024 * 1024),
                         48 * 1024 * 1024))

    out2d = pl.pallas_call(
        _ffn_kernel,
        out_shape=jax.ShapeDtypeStruct((Mp, D), x.dtype),
        grid=(Mp // tm, Dh // th),
        in_specs=[
            pl.BlockSpec((tm, D), lambda i, j: (i, 0)),   # x rows
            pl.BlockSpec((th, D), lambda i, j: (j, 0)),   # W1 rows
            pl.BlockSpec((D, th), lambda i, j: (0, j)),   # W2 cols
        ],
        out_specs=pl.BlockSpec((tm, D), lambda i, j: (i, 0)),
        scratch_shapes=[pltpu.VMEM((tm, D), jnp.float32)],
        compiler_params=pltpu.CompilerParams(
            dimension_semantics=("parallel", "arbitrary"),
            vmem_limit_bytes=vmem_limit,
        ),
    )(x2d, w1, w2)

    if Mp != M:
        out2d = out2d[:M]
    return out2d.reshape(B, T, D)


def _init_casted_linear_weight(key, out_features, in_features, dtype=jnp.float32):
    """Matches CastedLinear.reset_parameters: U(-bound, bound),
    bound = sqrt(3) * 0.5 * in_features**-0.5."""
    bound = (3.0 ** 0.5) * 0.5 * (in_features ** -0.5)
    return jax.random.uniform(key, (out_features, in_features),
                              dtype=dtype, minval=-bound, maxval=bound)


def _reference(x, w1, w2):
    h = jnp.einsum("btd,hd->bth", x.astype(jnp.float32), w1.astype(jnp.float32))
    h = jnp.maximum(h, 0.0) ** 2
    y = jnp.einsum("bth,dh->btd", h, w2.astype(jnp.float32))
    return y.astype(x.dtype)


if __name__ == "__main__":
    # Small shapes consistent with the module: B=2, T=8, dim=32, dim_mult=4.
    B, T, dim = 2, 8, 32
    dim_mult = 4.0
    dim_hidden = int(dim_mult * dim)   # 128

    key = jax.random.PRNGKey(0)
    kx, k1, k2 = jax.random.split(key, 3)

    x = jax.random.normal(kx, (B, T, dim), dtype=jnp.float32)
    w1 = _init_casted_linear_weight(k1, dim_hidden, dim)   # fc1.weight [Dh, D]
    w2 = _init_casted_linear_weight(k2, dim, dim_hidden)   # fc2.weight [D, Dh]

    out = ffn(x, w1, w2)
    out = jax.block_until_ready(out)

    ref = _reference(x, w1, w2)
    assert out.shape == x.shape and out.dtype == x.dtype
    assert jnp.allclose(out, ref, atol=1e-4, rtol=1e-4), \
        float(jnp.max(jnp.abs(out - ref)))

    print("KERNEL_OK")
</pallas_src>

<mosaic_0001>
module attributes {stable_mosaic.version = 11 : i64} {
  func.func @_ffn_kernel(%arg0: i32, %arg1: i32, %arg2: memref<16x32xf32, #tpu.memory_space<vmem>>, %arg3: memref<128x32xf32, #tpu.memory_space<vmem>>, %arg4: memref<32x128xf32, #tpu.memory_space<vmem>>, %arg5: memref<16x32xf32, #tpu.memory_space<vmem>>, %arg6: memref<16x32xf32, #tpu.memory_space<vmem>>) attributes {dimension_semantics = [#tpu.dimension_semantics<parallel>, #tpu.dimension_semantics<arbitrary>], iteration_bounds = array<i64: 1, 1>, scalar_prefetch = 0 : i64, scratch_operands = 1 : i64, tpu.core_type = #tpu.core_type<tc>, window_params = [{transform_indices = @transform_0, window_bounds = array<i64: 16, 32>}, {transform_indices = @transform_1, window_bounds = array<i64: 128, 32>}, {transform_indices = @transform_2, window_bounds = array<i64: 32, 128>}, {transform_indices = @transform_3, window_bounds = array<i64: 16, 32>}]} {
    %c0_i32 = arith.constant 0 : i32
    %0 = arith.cmpi eq, %arg1, %c0_i32 : i32
    %1 = arith.extui %0 : i1 to i32
    %c0_i32_0 = arith.constant 0 : i32
    %2 = arith.cmpi ne, %1, %c0_i32_0 : i32
    scf.if %2 {
      %cst_14 = arith.constant 0.000000e+00 : f32
      %17 = vector.broadcast %cst_14 : f32 to vector<16x32xf32>
      %c0_15 = arith.constant 0 : index
      %c0_16 = arith.constant 0 : index
      %18 = vector.load %arg6[%c0_15, %c0_16] : memref<16x32xf32, #tpu.memory_space<vmem>>, vector<16x32xf32>
      tpu.vector_store %arg6[%c0_15, %c0_16], %17 {strides = array<i32>} : memref<16x32xf32, #tpu.memory_space<vmem>>, vector<16x32xf32>,
    } else {
    }
    %c0 = arith.constant 0 : index
    %c0_1 = arith.constant 0 : index
    %3 = vector.load %arg2[%c0, %c0_1] : memref<16x32xf32, #tpu.memory_space<vmem>>, vector<16x32xf32>
    %c0_2 = arith.constant 0 : index
    %c0_3 = arith.constant 0 : index
    %4 = vector.load %arg3[%c0_2, %c0_3] : memref<128x32xf32, #tpu.memory_space<vmem>>, vector<128x32xf32>
    %cst = arith.constant dense<0.000000e+00> : vector<16x128xf32>
    %5 = tpu.matmul %3, %4, %cst {dimension_numbers = #tpu.dot_dimension_numbers<[1], [1], [0], [0], [0, 0, 1, 0], [], []>} : vector<16x32xf32>, vector<128x32xf32>, vector<16x128xf32> -> vector<16x128xf32>
    %cst_4 = arith.constant 0.000000e+00 : f32
    %6 = vector.broadcast %cst_4 : f32 to vector<16x128xf32>
    %7 = arith.maximumf %5, %6 : vector<16x128xf32>
    %8 = arith.mulf %7, %7 : vector<16x128xf32>
    %c0_5 = arith.constant 0 : index
    %c0_6 = arith.constant 0 : index
    %9 = vector.load %arg6[%c0_5, %c0_6] : memref<16x32xf32, #tpu.memory_space<vmem>>, vector<16x32xf32>
    %c0_7 = arith.constant 0 : index
    %c0_8 = arith.constant 0 : index
    %10 = vector.load %arg4[%c0_7, %c0_8] : memref<32x128xf32, #tpu.memory_space<vmem>>, vector<32x128xf32>
    %cst_9 = arith.constant dense<0.000000e+00> : vector<16x32xf32>
    %11 = tpu.matmul %8, %10, %cst_9 {dimension_numbers = #tpu.dot_dimension_numbers<[1], [1], [0], [0], [0, 0, 1, 0], [], []>} : vector<16x128xf32>, vector<32x128xf32>, vector<16x32xf32> -> vector<16x32xf32>
    %12 = arith.addf %9, %11 : vector<16x32xf32>
    %c0_10 = arith.constant 0 : index
    %c0_11 = arith.constant 0 : index
    %13 = vector.load %arg6[%c0_10, %c0_11] : memref<16x32xf32, #tpu.memory_space<vmem>>, vector<16x32xf32>
    tpu.vector_store %arg6[%c0_10, %c0_11], %12 {strides = array<i32>} : memref<16x32xf32, #tpu.memory_space<vmem>>, vector<16x32xf32>,
    %c0_i32_12 = arith.constant 0 : i32
    %14 = arith.cmpi eq, %arg1, %c0_i32_12 : i32
    %15 = arith.extui %14 : i1 to i32
    %c0_i32_13 = arith.constant 0 : i32
    %16 = arith.cmpi ne, %15, %c0_i32_13 : i32
    scf.if %16 {
      %c0_14 = arith.constant 0 : index
      %c0_15 = arith.constant 0 : index
      %17 = vector.load %arg6[%c0_14, %c0_15] : memref<16x32xf32, #tpu.memory_space<vmem>>, vector<16x32xf32>
      %c0_16 = arith.constant 0 : index
      %c0_17 = arith.constant 0 : index
      %18 = vector.load %arg5[%c0_16, %c0_17] : memref<16x32xf32, #tpu.memory_space<vmem>>, vector<16x32xf32>
      tpu.vector_store %arg5[%c0_16, %c0_17], %17 {strides = array<i32>} : memref<16x32xf32, #tpu.memory_space<vmem>>, vector<16x32xf32>,
    } else {
    }
    return
  }
  func.func @transform_0(%arg0: i32, %arg1: i32) -> (i32, i32) {
    %c0_i32 = arith.constant 0 : i32
    %c0_i32_0 = arith.constant 0 : i32
    return %arg0, %c0_i32 : i32, i32
  }
  func.func @transform_1(%arg0: i32, %arg1: i32) -> (i32, i32) {
    %c0_i32 = arith.constant 0 : i32
    %c0_i32_0 = arith.constant 0 : i32
    return %arg1, %c0_i32 : i32, i32
  }
  func.func @transform_2(%arg0: i32, %arg1: i32) -> (i32, i32) {
    %c0_i32 = arith.constant 0 : i32
    %c0_i32_0 = arith.constant 0 : i32
    return %c0_i32, %arg1 : i32, i32
  }
  func.func @transform_3(%arg0: i32, %arg1: i32) -> (i32, i32) {
    %c0_i32 = arith.constant 0 : i32
    %c0_i32_0 = arith.constant 0 : i32
    return %arg0, %c0_i32 : i32, i32
  }
}

</mosaic_0001>

<llo_original>
// kernel: tpu_custom_call.1
$region0: #{tpu_custom_call.1}
  #allocation0 [shape = 'u32[]', space=smem, size = 0x4, offset = 0x4, fixed_abs, tag = 'smem constant byte address 0x4 - core index']
  #allocation1 [shape = 'u32[144,128]{1,0:T(1,128)}', space=vmem, size = 0x12000, scoped, tag = 'internal scratch']
  #allocation2 [shape = 'f32[16,32]{1,0:T(8,128)}', space=vmem, size = 0x2000, scoped, tag = 'scratch operand']
  %s0 = inlined_call_operand.vmem [shape: f32[16,32], index: 0, kind: input, shape index: {}]
  %s1 = inlined_call_operand.vmem [shape: f32[128,32], index: 1, kind: input, shape index: {}]
  %s2 = inlined_call_operand.vmem [shape: f32[32,128], index: 2, kind: input, shape index: {}]
  %s3 = inlined_call_operand.hbm [shape: f32[16,32], index: 3, kind: output, shape index: {}]
  %s4 = sld [smem:[#allocation0]]
  $region30: #{tpu_custom_call.1} parent=0
    _
  %s6 = ssub.s32 1, %s4
  %s7 = scalar_select 0, %s6, %s4
  $region1: #{tpu_custom_call.1} parent=0
    #allocation3 [shape = 'u8[8192]{0}', space=vmem, size = 0x2000, scoped, tag = 'output window, operand 0, single buffered']
    #allocation4 [shape = 's32[1]{0}', space=sflag, size = 0x4, scoped, tag = 'scoped memory for tpu_custom_call.1']
    %8 = vsyncpa [#allocation4], 0
    // Predicated region
    $region2: #{tpu_custom_call.1} parent=1 // pred_check
      _
    $region3: #{tpu_custom_call.1} parent=1 // pred_check_branch
      %10 = sbr.rel (0) target = $region5
    $region4: #{tpu_custom_call.1} parent=1 // pred_region
      _
    $region5: #{tpu_custom_call.1} parent=1 // pred_fallthru
      _
    // Predicated region
    $region6: #{tpu_custom_call.1} parent=1 // pred_check
      _
    $region7: #{tpu_custom_call.1} parent=1 // pred_check_branch
      %12 = sbr.rel (0) target = $region9
    $region8: #{tpu_custom_call.1} parent=1 // pred_region
      _
    $region9: #{tpu_custom_call.1} parent=1 // pred_fallthru
      _
    // Predicated region
    $region10: #{tpu_custom_call.1} parent=1 // pred_check
      _
    $region11: #{tpu_custom_call.1} parent=1 // pred_check_branch
      %14 = sbr.rel (0) target = $region13
    $region12: #{tpu_custom_call.1} parent=1 // pred_region
      _
    $region13: #{tpu_custom_call.1} parent=1 // pred_fallthru
      _
    %p15 = scmp.eq.s32.totalorder 0, 0
    // Predicated region
    $region14: #{tpu_custom_call.1} parent=1 // pred_check
      %p16 = pneg %p15
    $region15: #{tpu_custom_call.1} parent=1 // pred_check_branch
      %18 = sbr.rel (%p16) target = $region17
    $region16: #{tpu_custom_call.1} parent=1 // pred_region
      %vm19 = vcmask 261120
      %20 = vst.msk [vmem:[#allocation2] sm:$0xff] %vm19, 0.0
      %21 = vst.msk [vmem:[#allocation2 + $0x8] sm:$0xff] %vm19, 0.0
    $region17: #{tpu_custom_call.1} parent=1 // pred_fallthru
      _
    %v22 = vld [vmem:[%s0] sm:$0xff]
    %v23 = vld [vmem:[%s0 + $0x8] sm:$0xff]
    %v24 = vld [vmem:[%s1] sm:$0xff]
    %v25 = vld [vmem:[%s1 + $0x8] sm:$0xff]
    %v26 = vld [vmem:[%s1 + $0x10] sm:$0xff]
    %v27 = vld [vmem:[%s1 + $0x18] sm:$0xff]
    %v28 = vld [vmem:[%s1 + $0x20] sm:$0xff]
    %v29 = vld [vmem:[%s1 + $0x28] sm:$0xff]
    %v30 = vld [vmem:[%s1 + $0x30] sm:$0xff]
    %v31 = vld [vmem:[%s1 + $0x38] sm:$0xff]
    %v32 = vld [vmem:[%s1 + $0x40] sm:$0xff]
    %v33 = vld [vmem:[%s1 + $0x48] sm:$0xff]
    %v34 = vld [vmem:[%s1 + $0x50] sm:$0xff]
    %v35 = vld [vmem:[%s1 + $0x58] sm:$0xff]
    %v36 = vld [vmem:[%s1 + $0x60] sm:$0xff]
    %v37 = vld [vmem:[%s1 + $0x68] sm:$0xff]
    %v38 = vld [vmem:[%s1 + $0x70] sm:$0xff]
    %v39 = vld [vmem:[%s1 + $0x78] sm:$0xff]
    %vm40 = vcmask 261120
    %v42 = vsel %vm40, %v22, 0
    %v45 = vsel %vm40, %v23, 0
    %v48 = vsel %vm40, %v24, 0
    %v51 = vsel %vm40, %v25, 0
    %v54 = vsel %vm40, %v26, 0
    %v57 = vsel %vm40, %v27, 0
    %v60 = vsel %vm40, %v28, 0
    %v63 = vsel %vm40, %v29, 0
    %v66 = vsel %vm40, %v30, 0
    %v69 = vsel %vm40, %v31, 0
    %v72 = vsel %vm40, %v32, 0
    %v75 = vsel %vm40, %v33, 0
    %v78 = vsel %vm40, %v34, 0
    %v81 = vsel %vm40, %v35, 0
    %v84 = vsel %vm40, %v36, 0
    %v87 = vsel %vm40, %v37, 0
    %v90 = vsel %vm40, %v38, 0
    %v93 = vsel %vm40, %v39, 0
    %95 = vmatprep.subr.mxu0 0.0
    %96 = vmatpush1.xpose.msra.mxu0 %v93
    %97 = vmatprep.subr.mxu0 0.0
    %98 = vmatpush1.xpose.msra.mxu0 %v90
    %99 = vmatprep.subr.mxu0 0.0
    %100 = vmatpush1.xpose.msra.mxu0 %v87
    %101 = vmatprep.subr.mxu0 0.0
    %102 = vmatpush1.xpose.msra.mxu0 %v84
    %103 = vmatprep.subr.mxu0 0.0
    %104 = vmatpush1.xpose.msra.mxu0 %v81
    %105 = vmatprep.subr.mxu0 0.0
    %106 = vmatpush1.xpose.msra.mxu0 %v78
    %107 = vmatprep.subr.mxu0 0.0
    %108 = vmatpush1.xpose.msra.mxu0 %v75
    %109 = vmatprep.subr.mxu0 0.0
    %110 = vmatpush1.xpose.msra.mxu0 %v72
    %111 = vmatprep.subr.mxu0 0.0
    %112 = vmatpush1.xpose.msra.mxu0 %v69
    %113 = vmatprep.subr.mxu0 0.0
    %114 = vmatpush1.xpose.msra.mxu0 %v66
    %115 = vmatprep.subr.mxu0 0.0
    %116 = vmatpush1.xpose.msra.mxu0 %v63
    %117 = vmatprep.subr.mxu0 0.0
    %118 = vmatpush1.xpose.msra.mxu0 %v60
    %119 = vmatprep.subr.mxu0 0.0
    %120 = vmatpush1.xpose.msra.mxu0 %v57
    %121 = vmatprep.subr.mxu0 0.0
    %122 = vmatpush1.xpose.msra.mxu0 %v54
    %123 = vmatprep.subr.mxu0 0.0
    %124 = vmatpush1.xpose.msra.mxu0 %v51
    %125 = vmatprep.subr.mxu0 0.0
    %126 = vmatpush1.xpose.msra.mxu0 %v48
    %127 = vmatprep.subr.mxu0 0.0
    %128 = vmatpush2.xpose.msra.mxu0 0.0
    %129 = vmatprep.subr.mxu0 0.0
    %130 = vmatpush2.xpose.msra.mxu0 0.0
    %131 = vmatprep.subr.mxu0 0.0
    %132 = vmatpush2.xpose.msra.mxu0 0.0
    %133 = vmatprep.subr.mxu0 0.0
    %134 = vmatpush2.xpose.msra.mxu0 0.0
    %135 = vmatprep.subr.mxu0 0.0
    %136 = vmatpush2.xpose.msra.mxu0 0.0
    %137 = vmatprep.subr.mxu0 0.0
    %138 = vmatpush2.xpose.msra.mxu0 0.0
    %139 = vmatprep.subr.mxu0 0.0
    %140 = vmatpush2.xpose.msra.mxu0 0.0
    %141 = vmatprep.subr.mxu0 0.0
    %142 = vmatpush2.xpose.msra.mxu0 0.0
    %143 = vmatprep.subr.mxu0 0.0
    %144 = vmatpush2.xpose.msra.mxu0 0.0
    %145 = vmatprep.subr.mxu0 0.0
    %146 = vmatpush2.xpose.msra.mxu0 0.0
    %147 = vmatprep.subr.mxu0 0.0
    %148 = vmatpush2.xpose.msra.mxu0 0.0
    %149 = vmatprep.subr.mxu0 0.0
    %150 = vmatpush2.xpose.msra.mxu0 0.0
    %151 = vmatprep.subr.mxu0 0.0
    %152 = vmatpush2.xpose.msra.mxu0 0.0
    %153 = vmatprep.subr.mxu0 0.0
    %154 = vmatpush2.xpose.msra.mxu0 0.0
    %155 = vmatprep.subr.mxu0 0.0
    %156 = vmatpush2.xpose.msra.mxu0 0.0
    %157 = vmatprep.subr.mxu0 0.0
    %158 = vmatpush2.xpose.msra.mxu0 0.0
    %159 = vmatprep.mubr.f32.mxu0 0.0
    %160 = vmatmul.mubr.f32.gmra.mxu0 %v42
    %v161 = vpop.f32.mrf.mxu0
    %v162 = vadd.f32 0.0, %v161
    %v163 = vpop.f32.mrf.mxu0
    %164 = vmatprep.mubr.f32.mxu0 0.0
    %165 = vmatmul.mubr.f32.gmra.mxu0 %v45
    %v166 = vpop.f32.mrf.mxu0
    %v167 = vadd.f32 0.0, %v166
    %v168 = vpop.f32.mrf.mxu0
    %169 = vdwg.mxu0
    %v170 = vmax.f32 %v162, 0.0
    %v171 = vmax.f32 %v167, 0.0
    %v172 = vmul.f32 %v170, %v170
    %v173 = vmul.f32 %v171, %v171
    %v174 = vld [vmem:[#allocation2] sm:$0xff]
    %v175 = vld [vmem:[#allocation2 + $0x8] sm:$0xff]
    %v176 = vld [vmem:[%s2] sm:$0xff]
    %v177 = vld [vmem:[%s2 + $0x8] sm:$0xff]
    %v178 = vld [vmem:[%s2 + $0x10] sm:$0xff]
    %v179 = vld [vmem:[%s2 + $0x18] sm:$0xff]
    %180 = vmatprep.subr.mxu0 0.0
    %181 = vmatpush1.xpose.msra.mxu0 0.0
    %182 = vmatprep.subr.mxu0 0.0
    %183 = vmatpush1.xpose.msra.mxu0 0.0
    %184 = vmatprep.subr.mxu0 0.0
    %185 = vmatpush1.xpose.msra.mxu0 0.0
    %186 = vmatprep.subr.mxu0 0.0
    %187 = vmatpush1.xpose.msra.mxu0 0.0
    %188 = vmatprep.subr.mxu0 0.0
    %189 = vmatpush1.xpose.msra.mxu0 0.0
    %190 = vmatprep.subr.mxu0 0.0
    %191 = vmatpush1.xpose.msra.mxu0 0.0
    %192 = vmatprep.subr.mxu0 0.0
    %193 = vmatpush1.xpose.msra.mxu0 0.0
    %194 = vmatprep.subr.mxu0 0.0
    %195 = vmatpush1.xpose.msra.mxu0 0.0
    %196 = vmatprep.subr.mxu0 0.0
    %197 = vmatpush1.xpose.msra.mxu0 0.0
    %198 = vmatprep.subr.mxu0 0.0
    %199 = vmatpush1.xpose.msra.mxu0 0.0
    %200 = vmatprep.subr.mxu0 0.0
    %201 = vmatpush1.xpose.msra.mxu0 0.0
    %202 = vmatprep.subr.mxu0 0.0
    %203 = vmatpush1.xpose.msra.mxu0 0.0
    %204 = vmatprep.subr.mxu0 0.0
    %205 = vmatpush1.xpose.msra.mxu0 %v179
    %206 = vmatprep.subr.mxu0 0.0
    %207 = vmatpush1.xpose.msra.mxu0 %v178
    %208 = vmatprep.subr.mxu0 0.0
    %209 = vmatpush1.xpose.msra.mxu0 %v177
    %210 = vmatprep.subr.mxu0 0.0
    %211 = vmatpush1.xpose.msra.mxu0 %v176
    %212 = vmatprep.subr.mxu0 0.0
    %213 = vmatpush2.xpose.msra.mxu0 0.0
    %214 = vmatprep.subr.mxu0 0.0
    %215 = vmatpush2.xpose.msra.mxu0 0.0
    %216 = vmatprep.subr.mxu0 0.0
    %217 = vmatpush2.xpose.msra.mxu0 0.0
    %218 = vmatprep.subr.mxu0 0.0
    %219 = vmatpush2.xpose.msra.mxu0 0.0
    %220 = vmatprep.subr.mxu0 0.0
    %221 = vmatpush2.xpose.msra.mxu0 0.0
    %222 = vmatprep.subr.mxu0 0.0
    %223 = vmatpush2.xpose.msra.mxu0 0.0
    %224 = vmatprep.subr.mxu0 0.0
    %225 = vmatpush2.xpose.msra.mxu0 0.0
    %226 = vmatprep.subr.mxu0 0.0
    %227 = vmatpush2.xpose.msra.mxu0 0.0
    %228 = vmatprep.subr.mxu0 0.0
    %229 = vmatpush2.xpose.msra.mxu0 0.0
    %230 = vmatprep.subr.mxu0 0.0
    %231 = vmatpush2.xpose.msra.mxu0 0.0
    %232 = vmatprep.subr.mxu0 0.0
    %233 = vmatpush2.xpose.msra.mxu0 0.0
    %234 = vmatprep.subr.mxu0 0.0
    %235 = vmatpush2.xpose.msra.mxu0 0.0
    %236 = vmatprep.subr.mxu0 0.0
    %237 = vmatpush2.xpose.msra.mxu0 0.0
    %238 = vmatprep.subr.mxu0 0.0
    %239 = vmatpush2.xpose.msra.mxu0 0.0
    %240 = vmatprep.subr.mxu0 0.0
    %241 = vmatpush2.xpose.msra.mxu0 0.0
    %242 = vmatprep.subr.mxu0 0.0
    %243 = vmatpush2.xpose.msra.mxu0 0.0
    %244 = vmatprep.mubr.f32.mxu0 0.0
    %245 = vmatmul.mubr.f32.gmra.mxu0 %v172
    %v246 = vpop.f32.mrf.mxu0
    %v247 = vadd.f32 0.0, %v246
    %v248 = vpop.f32.mrf.mxu0
    %249 = vmatprep.mubr.f32.mxu0 0.0
    %250 = vmatmul.mubr.f32.gmra.mxu0 %v173
    %v251 = vpop.f32.mrf.mxu0
    %v252 = vadd.f32 0.0, %v251
    %v253 = vpop.f32.mrf.mxu0
    %254 = vdwg.mxu0
    %v255 = vadd.f32 %v174, %v247
    %v256 = vadd.f32 %v175, %v252
    %257 = vst.msk [vmem:[#allocation2] sm:$0xff] %vm40, %v255
    %258 = vst.msk [vmem:[#allocation2 + $0x8] sm:$0xff] %vm40, %v256
    // Predicated region
    $region18: #{tpu_custom_call.1} parent=1 // pred_check
      %p259 = pneg %p15
    $region19: #{tpu_custom_call.1} parent=1 // pred_check_branch
      %261 = sbr.rel (%p259) target = $region21
    $region20: #{tpu_custom_call.1} parent=1 // pred_region
      %v262 = vld [vmem:[#allocation2] sm:$0xff]
      %v263 = vld [vmem:[#allocation2 + $0x8] sm:$0xff]
      %264 = vst.msk [vmem:[#allocation3] sm:$0xff] %vm40, %v262
      %265 = vst.msk [vmem:[#allocation3 + $0x8] sm:$0xff] %vm40, %v263
    $region21: #{tpu_custom_call.1} parent=1 // pred_fallthru
      _
    // Predicated region
    $region22: #{tpu_custom_call.1} parent=1 // pred_check
      _
    $region23: #{tpu_custom_call.1} parent=1 // pred_check_branch
      %267 = sbr.rel (0) target = $region25
    $region24: #{tpu_custom_call.1} parent=1 // pred_region
      %s269 = ssub.s32 256, 256
      %270 = vsyncadd [#allocation4], %s269
      %s271 = sshll.u32 [#allocation3], 4
      %s272 = int_to_ptr.vmem [resolvable:$true] %s271
      %277 = dma.vmem_to_hbm [thread:$0]  %s272, 256, %s3, [#allocation4], 128, 128, 8
    $region25: #{tpu_custom_call.1} parent=1 // pred_fallthru
      _
    // Predicated region
    $region26: #{tpu_custom_call.1} parent=1 // pred_check
      _
    $region27: #{tpu_custom_call.1} parent=1 // pred_check_branch
      %279 = sbr.rel (0) target = $region29
    $region28: #{tpu_custom_call.1} parent=1 // pred_region
      %280 = dma.done [#allocation4], 256
    $region29: #{tpu_custom_call.1} parent=1 // pred_fallthru
      _
    %281 = vsyncpa [#allocation4], 1

</llo_original>
